<compile_context>
chip_gen: v5e
topology: v5e:2x2
jax: 0.10.0
libtpu: 0.0.40
codegen_flags: <defaults>
</compile_context>

<pallas_src>
import jax
import jax.numpy as jnp
from jax.experimental import pallas as pl
from jax.experimental.pallas import tpu as pltpu

_MIB = 1024 * 1024


def _logitnorm2_kernel(x_ref, t_ref, y_ref, nll_ref):
    t = t_ref[...]                            # (TN, 1) f32 per-sample temperature
    y = y_ref[...]                            # (TN, 1) int32 labels

    # Pass 1: scaled logits z = x * T; row max and target logit are reduced in
    # the same pass, so only ONE (TN, C) f32 intermediate is live (no shifted
    # copy is ever materialized).
    z = x_ref[...].astype(jnp.float32) * t    # (TN, C)
    m = jnp.max(z, axis=1, keepdims=True)     # (TN, 1)
    col = jax.lax.broadcasted_iota(jnp.int32, z.shape, 1)
    tgt = jnp.sum(jnp.where(col == y, z, 0.0), axis=1, keepdims=True)  # z[y]

    # Pass 2: recompute x*T - m on the fly inside the exp-sum (re-read from the
    # VMEM input tile; cheap VPU ops) instead of reusing a stored zc scratch.
    s = jnp.sum(jnp.exp(x_ref[...].astype(jnp.float32) * t - m),
                axis=1, keepdims=True)        # (TN, 1)

    # Per-row NLL: logsumexp(z) - z[y] == log(sum(exp(z - m))) - (z[y] - m)
    nll_ref[...] = jnp.log(s) - (tgt - m)


def _vmem_capacity_bytes():
    # Generation-aware VMEM capacity (v5e/v6e: 128 MiB, v7x: 64 MiB per TC).
    try:
        return int(pltpu.get_tpu_info().vmem_capacity_bytes)
    except Exception:
        return 64 * _MIB  # conservative fallback (v7x per-TC size)


def _choose_tiling(N, C, itemsize, requested=None):
    """Pick the batch-tile row count TN and an explicit scoped-VMEM limit."""
    vmem_cap = _vmem_capacity_bytes()
    # Per-step budget: <= ~48 MiB on v7x (64 MiB VMEM/TC), <= ~80 MiB otherwise.
    budget = 48 * _MIB if vmem_cap <= 64 * _MIB else 80 * _MIB

    # Per-row VMEM footprint:
    #   2 * C * itemsize   double-buffered logits input tile
    #   2 * C * 4          up to two (TN, C) f32 intermediates co-live in-body
    #   3 * 2 * 128 * 4    T / y / nll blocks lane-padded to 128, double-buffered
    per_row = 2 * C * itemsize + 2 * C * 4 + 3 * 2 * 128 * 4

    if requested is not None:
        tn = max(8, (int(requested) // 8) * 8)
    else:
        # ~8 MiB of logits per block: per-grid-step overhead (~0.35 us) becomes
        # negligible vs the tile's DMA time; bounded by the VMEM budget.
        tn_target = (8 * _MIB) // max(1, C * itemsize)
        tn_budget = budget // per_row
        tn = max(8, (min(tn_target, tn_budget) // 8) * 8)

    if tn >= N:
        tn = N  # single block spanning the full array dims

    # Explicit scoped-VMEM limit sized from the actual per-step footprint, with
    # headroom; the 16/32 MiB defaults would otherwise cap the larger tiles.
    est = tn * per_row + 2 * _MIB
    vmem_limit = int(min(vmem_cap - 4 * _MIB, max(32 * _MIB, est)))
    return tn, vmem_limit


def logitnorm2(x, y, T=None, *, block_rows=None, core_parallel=False):
    """x: (N, C) float logits (f32 or bf16), y: (N,) int labels, T: optional (N,) scale."""
    N, C = x.shape
    y2 = y.astype(jnp.int32).reshape(N, 1)
    if T is None:
        T = jnp.ones((N,), dtype=jnp.float32)  # torch.ones_like(y) -> unit scale
    t2 = T.astype(jnp.float32).reshape(N, 1)

    tn, vmem_limit = _choose_tiling(N, C, x.dtype.itemsize, block_rows)
    grid = (pl.cdiv(N, tn),)

    # v7x: each TC drives only ~half the chip's HBM bandwidth. "parallel" lets
    # the runtime shard this 1-D grid across TensorCores; if a trace shows a
    # single TC, pass core_parallel=True to force explicit core sharding.
    dim_sem = (pltpu.CORE_PARALLEL,) if core_parallel else ("parallel",)

    cost = pl.CostEstimate(
        flops=7 * N * C,                    # mul, cmp, select, sub, mul, sub, adds
        transcendentals=N * C + N,          # exp per element + log per row
        bytes_accessed=N * C * x.dtype.itemsize + 3 * N * 4,
    )

    nll = pl.pallas_call(
        _logitnorm2_kernel,
        out_shape=jax.ShapeDtypeStruct((N, 1), jnp.float32),
        grid=grid,
        in_specs=[
            pl.BlockSpec((tn, C), lambda i: (i, 0)),   # logits tile
            pl.BlockSpec((tn, 1), lambda i: (i, 0)),   # T tile
            pl.BlockSpec((tn, 1), lambda i: (i, 0)),   # labels tile
        ],
        out_specs=pl.BlockSpec((tn, 1), lambda i: (i, 0)),  # per-row NLL
        compiler_params=pltpu.CompilerParams(
            dimension_semantics=dim_sem,
            vmem_limit_bytes=vmem_limit,
        ),
        cost_estimate=cost,
    )(x, t2, y2)

    # Mean cross-entropy over the true batch (tiny reduction, left to XLA).
    return jnp.mean(nll)


if __name__ == "__main__":
    key = jax.random.PRNGKey(0)
    kx, ky = jax.random.split(key)

    # Small shapes consistent with the module: batch=8 logits over 32 classes.
    N, C = 8, 32
    x = jax.random.normal(kx, (N, C), dtype=jnp.float32)
    y = jax.random.randint(ky, (N,), 0, C, dtype=jnp.int32)

    loss = logitnorm2(x, y)                      # T=None path (module default)
    jax.block_until_ready(loss)
    ref = jnp.mean(jax.nn.logsumexp(x, axis=1) - x[jnp.arange(N), y])
    assert jnp.allclose(loss, ref, atol=1e-5), (loss, ref)

    # Exercise explicit T, multi-tile grid, and a ragged last tile (100 % 32 != 0).
    N2, C2 = 100, 256
    kx2, ky2, kt2 = jax.random.split(jax.random.PRNGKey(1), 3)
    x2 = jax.random.normal(kx2, (N2, C2), dtype=jnp.float32)
    y2 = jax.random.randint(ky2, (N2,), 0, C2, dtype=jnp.int32)
    T2 = jax.random.uniform(kt2, (N2,), dtype=jnp.float32, minval=0.5, maxval=2.0)
    loss2 = logitnorm2(x2, y2, T2, block_rows=32)
    jax.block_until_ready(loss2)
    z2 = x2 * T2[:, None]
    ref2 = jnp.mean(jax.nn.logsumexp(z2, axis=1) - z2[jnp.arange(N2), y2])
    assert jnp.allclose(loss2, ref2, atol=1e-5), (loss2, ref2)

    # Auto-chosen (large) tile on the same data: exercises the budget-derived TN
    # and the explicit vmem_limit_bytes path.
    loss2b = logitnorm2(x2, y2, T2)
    jax.block_until_ready(loss2b)
    assert jnp.allclose(loss2b, ref2, atol=1e-5), (loss2b, ref2)

    # bf16 logits path (half the HBM traffic); math still done in f32 in-kernel.
    x3 = x2.astype(jnp.bfloat16)
    loss3 = logitnorm2(x3, y2, T2, block_rows=32)
    jax.block_until_ready(loss3)
    z3 = x3.astype(jnp.float32) * T2[:, None]
    ref3 = jnp.mean(jax.nn.logsumexp(z3, axis=1) - z3[jnp.arange(N2), y2])
    assert jnp.allclose(loss3, ref3, atol=1e-4), (loss3, ref3)

    print("KERNEL_OK")
</pallas_src>

<mosaic_0001>
module attributes {stable_mosaic.version = 11 : i64} {
  func.func @_logitnorm2_kernel(%arg0: i32, %arg1: memref<8x32xf32, #tpu.memory_space<vmem>>, %arg2: memref<8x1xf32, #tpu.memory_space<vmem>>, %arg3: memref<8x1xi32, #tpu.memory_space<vmem>>, %arg4: memref<8x1xf32, #tpu.memory_space<vmem>>) attributes {dimension_semantics = [#tpu.dimension_semantics<parallel>], iteration_bounds = array<i64: 1>, scalar_prefetch = 0 : i64, scratch_operands = 0 : i64, tpu.core_type = #tpu.core_type<tc>, window_params = [{transform_indices = @transform_0, window_bounds = array<i64: 8, 32>}, {transform_indices = @transform_1, window_bounds = array<i64: 8, 1>}, {transform_indices = @transform_2, window_bounds = array<i64: 8, 1>}, {transform_indices = @transform_3, window_bounds = array<i64: 8, 1>}]} {
    %c0 = arith.constant 0 : index
    %c0_0 = arith.constant 0 : index
    %0 = vector.load %arg2[%c0, %c0_0] : memref<8x1xf32, #tpu.memory_space<vmem>>, vector<8x1xf32>
    %c0_1 = arith.constant 0 : index
    %c0_2 = arith.constant 0 : index
    %1 = vector.load %arg3[%c0_1, %c0_2] : memref<8x1xi32, #tpu.memory_space<vmem>>, vector<8x1xi32>
    %c0_3 = arith.constant 0 : index
    %c0_4 = arith.constant 0 : index
    %2 = vector.load %arg1[%c0_3, %c0_4] : memref<8x32xf32, #tpu.memory_space<vmem>>, vector<8x32xf32>
    %3 = vector.broadcast %0 : vector<8x1xf32> to vector<8x32xf32>
    %4 = arith.mulf %2, %3 : vector<8x32xf32>
    %cst = arith.constant dense<0xFF800000> : vector<8xf32>
    %5 = vector.multi_reduction <maximumf>, %4, %cst [1] : vector<8x32xf32> to vector<8xf32>
    %6 = vector.shape_cast %5 : vector<8xf32> to vector<8x1xf32>
    %7 = tpu.iota {dimensions = array<i32: 1>} : vector<8x32xi32>
    %8 = vector.broadcast %1 : vector<8x1xi32> to vector<8x32xi32>
    %9 = arith.cmpi eq, %7, %8 : vector<8x32xi32>
    %cst_5 = arith.constant 0.000000e+00 : f32
    %10 = vector.broadcast %cst_5 : f32 to vector<8x32xf32>
    %11 = arith.select %9, %4, %10 : vector<8x32xi1>, vector<8x32xf32>
    %cst_6 = arith.constant dense<0.000000e+00> : vector<8xf32>
    %12 = vector.multi_reduction <add>, %11, %cst_6 [1] : vector<8x32xf32> to vector<8xf32>
    %13 = vector.shape_cast %12 : vector<8xf32> to vector<8x1xf32>
    %c0_7 = arith.constant 0 : index
    %c0_8 = arith.constant 0 : index
    %14 = vector.load %arg1[%c0_7, %c0_8] : memref<8x32xf32, #tpu.memory_space<vmem>>, vector<8x32xf32>
    %15 = vector.broadcast %0 : vector<8x1xf32> to vector<8x32xf32>
    %16 = arith.mulf %14, %15 : vector<8x32xf32>
    %17 = vector.broadcast %6 : vector<8x1xf32> to vector<8x32xf32>
    %18 = arith.subf %16, %17 : vector<8x32xf32>
    %19 = math.exp %18 : vector<8x32xf32>
    %cst_9 = arith.constant dense<0.000000e+00> : vector<8xf32>
    %20 = vector.multi_reduction <add>, %19, %cst_9 [1] : vector<8x32xf32> to vector<8xf32>
    %21 = vector.shape_cast %20 : vector<8xf32> to vector<8x1xf32>
    %22 = math.log %21 : vector<8x1xf32>
    %23 = arith.subf %13, %6 : vector<8x1xf32>
    %24 = arith.subf %22, %23 : vector<8x1xf32>
    %c0_10 = arith.constant 0 : index
    %c0_11 = arith.constant 0 : index
    %25 = vector.load %arg4[%c0_10, %c0_11] : memref<8x1xf32, #tpu.memory_space<vmem>>, vector<8x1xf32>
    tpu.vector_store %arg4[%c0_10, %c0_11], %24 {strides = array<i32>} : memref<8x1xf32, #tpu.memory_space<vmem>>, vector<8x1xf32>,
    return
  }
  func.func @transform_0(%arg0: i32) -> (i32, i32) {
    %c0_i32 = arith.constant 0 : i32
    %c0_i32_0 = arith.constant 0 : i32
    return %arg0, %c0_i32 : i32, i32
  }
  func.func @transform_1(%arg0: i32) -> (i32, i32) {
    %c0_i32 = arith.constant 0 : i32
    %c0_i32_0 = arith.constant 0 : i32
    return %arg0, %c0_i32 : i32, i32
  }
  func.func @transform_2(%arg0: i32) -> (i32, i32) {
    %c0_i32 = arith.constant 0 : i32
    %c0_i32_0 = arith.constant 0 : i32
    return %arg0, %c0_i32 : i32, i32
  }
  func.func @transform_3(%arg0: i32) -> (i32, i32) {
    %c0_i32 = arith.constant 0 : i32
    %c0_i32_0 = arith.constant 0 : i32
    return %arg0, %c0_i32 : i32, i32
  }
}

</mosaic_0001>

<llo_original>
// kernel: tpu_custom_call.1
$region0: #{tpu_custom_call.1}
  #allocation0 [shape = 'u32[]', space=smem, size = 0x4, offset = 0x4, fixed_abs, tag = 'smem constant byte address 0x4 - core index']
  #allocation1 [shape = 'u32[72,128]{1,0:T(1,128)}', space=vmem, size = 0x9000, scoped, tag = 'internal scratch']
  %s0 = inlined_call_operand.vmem [shape: f32[8,32], index: 0, kind: input, shape index: {}]
  %s1 = inlined_call_operand.vmem [shape: f32[8,1], index: 1, kind: input, shape index: {}]
  %s2 = inlined_call_operand.vmem [shape: s32[8,1], index: 2, kind: input, shape index: {}]
  %s3 = inlined_call_operand.vmem [shape: f32[8,1], index: 3, kind: output, shape index: {}]
  %s4 = sld [smem:[#allocation0]]
  $region22: #{tpu_custom_call.1} parent=0
    _
  %s6 = ssub.s32 1, %s4
  %s7 = scalar_select 0, %s6, %s4
  // Predicated region
  $region2: #{tpu_custom_call.1} parent=0 // pred_check
    _
  $region3: #{tpu_custom_call.1} parent=0 // pred_check_branch
    %9 = sbr.rel (0) target = $region5
  $region4: #{tpu_custom_call.1} parent=0 // pred_region
    _
  $region5: #{tpu_custom_call.1} parent=0 // pred_fallthru
    _
  // Predicated region
  $region6: #{tpu_custom_call.1} parent=0 // pred_check
    _
  $region7: #{tpu_custom_call.1} parent=0 // pred_check_branch
    %11 = sbr.rel (0) target = $region9
  $region8: #{tpu_custom_call.1} parent=0 // pred_region
    _
  $region9: #{tpu_custom_call.1} parent=0 // pred_fallthru
    _
  // Predicated region
  $region10: #{tpu_custom_call.1} parent=0 // pred_check
    _
  $region11: #{tpu_custom_call.1} parent=0 // pred_check_branch
    %13 = sbr.rel (0) target = $region13
  $region12: #{tpu_custom_call.1} parent=0 // pred_region
    _
  $region13: #{tpu_custom_call.1} parent=0 // pred_fallthru
    _
  %v14 = vld [vmem:[%s1] sm:$0xff]
  %v15 = vld [vmem:[%s2] sm:$0xff]
  %v16 = vld [vmem:[%s0] sm:$0xff]
  %18 = vset.pattern.permute.xlu0 0
  %19 = vperm.xlu0 %18, %v14
  %v20 = vpop.permute.xlu0 %19
  %v22 = vmul.f32 %v16, %v20
  %vm23 = vcmask 261120
  %v24 = vsel %vm23, %v22, -inf
  %25 = vmax.xlane.f32.xlu0 %v24
  %v26 = vpop.xlane.xlu0 %25
  %v27 = vlaneseq
  %v28 = vand.u32 %v27, 127
  %29 = vset.pattern.permute.xlu0 0
  %30 = vperm.xlu0 %29, %v15
  %v31 = vpop.permute.xlu0 %30
  %vm32 = vcmp.eq.s32.totalorder %v28, %v31
  %v33 = vsel %vm32, %v22, 0.0
  %v34 = vsel %vm23, %v33, 0.0
  %35 = vadd.xlane.f32.xlu0 %v34
  %v36 = vpop.xlane.xlu0 %35
  %v37 = vsub.f32 %v22, %v26
  %v38 = vmul.f32 %v37, 1.442695
  %v39 = vpow.pop %v38
  %v40 = vsel %vm23, %v39, 0.0
  %41 = vadd.xlane.f32.xlu0 %v40
  %v42 = vpop.xlane.xlu0 %41
  %v43 = vlog2.pop %v42
  %v44 = vmul.f32 %v43, 0.6931472
  %v45 = vsub.f32 %v36, %v26
  %v46 = vsub.f32 %v44, %v45
  %vm47 = vcmask 7168
  %48 = vst.msk [vmem:[%s3] sm:$0xff] %vm47, %v46
  // Predicated region
  $region14: #{tpu_custom_call.1} parent=0 // pred_check
    _
  $region15: #{tpu_custom_call.1} parent=0 // pred_check_branch
    %50 = sbr.rel (0) target = $region17
  $region16: #{tpu_custom_call.1} parent=0 // pred_region
    _
  $region17: #{tpu_custom_call.1} parent=0 // pred_fallthru
    _
  // Predicated region
  $region18: #{tpu_custom_call.1} parent=0 // pred_check
    _
  $region19: #{tpu_custom_call.1} parent=0 // pred_check_branch
    %52 = sbr.rel (0) target = $region21
  $region20: #{tpu_custom_call.1} parent=0 // pred_region
    _
  $region21: #{tpu_custom_call.1} parent=0 // pred_fallthru
    _

</llo_original>
